<compile_context>
chip_gen: v7x
topology: tpu7x:2x2x1
jax: 0.10.0
libtpu: 0.0.40
codegen_flags: <defaults>
</compile_context>

<pallas_src>
import functools

import jax
import jax.numpy as jnp
from jax.experimental import pallas as pl
from jax.experimental.pallas import tpu as pltpu

EPS = 1e-5
PW = 128  # lane-dense slab / output width


def _layernorm(x, gamma, beta):
    mu = jnp.mean(x, axis=-1, keepdims=True)
    var = jnp.mean((x - mu) ** 2, axis=-1, keepdims=True)
    return (x - mu) * jax.lax.rsqrt(var + EPS) * gamma + beta


def planner_kernel(mem_ref, ego_ref, par_ref, out_ref, *, B, S, D, ff, Ce_pad, out_w):
    # ---- static row offsets into the packed parameter slab ---------------------
    R_WSV = 0                    # (D, 2D)  [Wk @ diag(q_c) @ block_ones * scale | Wv]
    R_W1 = D                     # (D, ff)
    R_WOC = 2 * D                # (D, D)
    R_WAX = 3 * D                # (D, D)
    R_WB = 4 * D                 # (D, D)
    R_WC = 5 * D                 # (D, out_w) zero-padded to lane-dense width
    R_W2 = 6 * D                 # (ff, D)
    R_WAE = 6 * D + ff           # (Ce_pad, D) zero-padded rows
    R_B = 6 * D + ff + Ce_pad    # bias / LN / precomputed-prefix rows

    # ---- fused score/V projection over all (batch, position) rows: one matmul --
    mem = mem_ref[...]                                             # (B*S, D)
    wsv = par_ref[R_WSV:R_WSV + D, 0:2 * D]
    bsv = par_ref[R_B + 0:R_B + 1, 0:2 * D]
    sv = jnp.dot(mem, wsv, preferred_element_type=jnp.float32) + bsv   # (B*S, 2D)

    s3 = sv[:, 0:D].reshape(B, S, D)       # per-lane, head-broadcast scaled scores
    v3 = sv[:, D:2 * D].reshape(B, S, D)   # V projection

    # ---- softmax over S (per batch, per lane) + weighted V sum, vectorized -----
    m = jnp.max(s3, axis=1, keepdims=True)
    p = jnp.exp(s3 - m)
    attn = jnp.sum(p * v3, axis=1) / jnp.sum(p, axis=1)            # (B, D)

    # ---- cross-attn output projection + residual(x0) + LN2 ---------------------
    wo_c = par_ref[R_WOC:R_WOC + D, 0:D]
    bo_c = par_ref[R_B + 1:R_B + 2, 0:D]
    x0 = par_ref[R_B + 11:R_B + 12, 0:D]     # precomputed parameter-only prefix
    g2 = par_ref[R_B + 2:R_B + 3, 0:D]
    be2 = par_ref[R_B + 3:R_B + 4, 0:D]
    ca = jnp.dot(attn, wo_c, preferred_element_type=jnp.float32) + bo_c
    x1 = _layernorm(x0 + ca, g2, be2)                              # (B, D)

    # ---- FFN + LN3 --------------------------------------------------------------
    w1 = par_ref[R_W1:R_W1 + D, 0:ff]
    b1 = par_ref[R_B + 6:R_B + 7, 0:ff]
    w2 = par_ref[R_W2:R_W2 + ff, 0:D]
    b2 = par_ref[R_B + 7:R_B + 8, 0:D]
    g3 = par_ref[R_B + 4:R_B + 5, 0:D]
    be3 = par_ref[R_B + 5:R_B + 6, 0:D]
    h1 = jax.nn.relu(jnp.dot(x1, w1, preferred_element_type=jnp.float32) + b1)
    ffo = jnp.dot(h1, w2, preferred_element_type=jnp.float32) + b2
    x2 = _layernorm(x1 + ffo, g3, be3)       # == ego_query_final[:, 0], (B, D)

    # ---- EgoFutDecoder MLP on cat([x2, ego]) as a split matmul ------------------
    ego = ego_ref[...]                                             # (B, Ce_pad)
    wa_x = par_ref[R_WAX:R_WAX + D, 0:D]
    wa_e = par_ref[R_WAE:R_WAE + Ce_pad, 0:D]
    ba = par_ref[R_B + 8:R_B + 9, 0:D]
    wb = par_ref[R_WB:R_WB + D, 0:D]
    bb = par_ref[R_B + 9:R_B + 10, 0:D]
    wc = par_ref[R_WC:R_WC + D, 0:out_w]
    bc = par_ref[R_B + 10:R_B + 11, 0:out_w]

    hh = jax.nn.relu(jnp.dot(x2, wa_x, preferred_element_type=jnp.float32)
                     + jnp.dot(ego, wa_e, preferred_element_type=jnp.float32) + ba)
    hh = jax.nn.relu(jnp.dot(hh, wb, preferred_element_type=jnp.float32) + bb)
    out = jnp.dot(hh, wc, preferred_element_type=jnp.float32) + bc  # (B, 128) dense
    out_ref[...] = out.astype(out_ref.dtype)


def planner_forward(params, bev_feature, ego_state, *, num_heads=4, fut_steps=2):
    B, T, C, H, W = bev_feature.shape
    D = params["eq"].shape[-1]
    assert C == D, "BEV channel dim must equal embed_dims for cross-attention"
    assert D % num_heads == 0, "embed_dims must be divisible by num_heads"
    S = H * W
    Ce = ego_state.shape[-1]
    Ce_pad = ((Ce + 7) // 8) * 8
    ff = params["w1"].shape[-1]
    out_dim = params["wc"].shape[-1]
    hd = D // num_heads
    scale = 1.0 / float(hd) ** 0.5
    assert max(2 * D, ff, out_dim, D) <= PW

    f32 = lambda a: jnp.asarray(a, jnp.float32)
    hi = jax.lax.Precision.HIGHEST
    mm = lambda a, b: jnp.dot(a, b, precision=hi)

    # glue: NCHW -> (B*S, D) rows (== bev_feature[:, 0].flatten(-2,-1).permute(0,2,1))
    mem = bev_feature[:, 0].reshape(B, C, S).transpose(0, 2, 1).reshape(B * S, D)
    mem = mem.astype(jnp.float32)
    ego_pad = jnp.pad(f32(ego_state), ((0, 0), (0, Ce_pad - Ce)))

    # ---- hoisted parameter-only prefix (no data dependence) --------------------
    # length-1 self-attention: softmax over a single key == identity, only V used
    eq = f32(params["eq"])
    v_s = mm(eq, f32(params["wqkv_s"])[:, 2 * D:3 * D]) + f32(params["bqkv_s"])[:, 2 * D:3 * D]
    sa = mm(v_s, f32(params["wo_s"])) + f32(params["bo_s"])
    ln = f32(params["ln"])
    x0 = _layernorm(eq + sa, ln[0:1], ln[1:2])                          # (1, D)
    q_c = mm(x0, f32(params["wqkv_c"])[:, 0:D]) + f32(params["bqkv_c"])[:, 0:D]

    # ---- fold q_c, per-head block mask and score scale into the K projection ---
    lane = jnp.arange(D)
    block_ones = (lane[:, None] // hd == lane[None, :] // hd).astype(jnp.float32)
    qmask = (q_c.reshape(D, 1) * block_ones) * scale                    # (D, D)
    wk = f32(params["wqkv_c"])[:, D:2 * D]
    bk = f32(params["bqkv_c"])[:, D:2 * D]
    wv = f32(params["wqkv_c"])[:, 2 * D:3 * D]
    bv = f32(params["bqkv_c"])[:, 2 * D:3 * D]
    wsv = jnp.concatenate([mm(wk, qmask), wv], axis=1)                  # (D, 2D)
    bsv = jnp.concatenate([mm(bk, qmask), bv], axis=1)                  # (1, 2D)

    # ---- pack everything into ONE lane-aligned (R, 128) slab -------------------
    def padw(a, rows=None):
        a = f32(a)
        r, c = a.shape
        rr = r if rows is None else rows
        return jnp.pad(a, ((0, rr - r), (0, PW - c)))

    def row(v):
        v = f32(v).reshape(1, -1)
        return jnp.pad(v, ((0, 0), (0, PW - v.shape[1])))

    bias_block = jnp.concatenate([
        row(bsv),                # 0
        row(params["bo_c"]),     # 1
        row(ln[2]), row(ln[3]),  # 2,3  LN2 gamma/beta
        row(ln[4]), row(ln[5]),  # 4,5  LN3 gamma/beta
        row(params["b1"]),       # 6
        row(params["b2"]),       # 7
        row(params["ba"]),       # 8
        row(params["bb"]),       # 9
        row(params["bc"]),       # 10  (zero-padded to lane-dense output width)
        row(x0),                 # 11  precomputed prefix
        jnp.zeros((4, PW), jnp.float32),
    ], axis=0)                   # (16, 128)

    slab = jnp.concatenate([
        padw(wsv),                              # rows [0, D)
        padw(params["w1"]),                     # [D, 2D)
        padw(params["wo_c"]),                   # [2D, 3D)
        padw(params["wa_x"]),                   # [3D, 4D)
        padw(params["wb"]),                     # [4D, 5D)
        padw(params["wc"]),                     # [5D, 6D)  zero-padded to 128 lanes
        padw(params["w2"]),                     # [6D, 6D+ff)
        padw(params["wa_e"], rows=Ce_pad),      # [6D+ff, 6D+ff+Ce_pad)
        bias_block,                             # [6D+ff+Ce_pad, ...+16)
    ], axis=0)

    kernel = functools.partial(planner_kernel, B=B, S=S, D=D, ff=ff,
                               Ce_pad=Ce_pad, out_w=PW)

    out_full = pl.pallas_call(
        kernel,
        out_shape=jax.ShapeDtypeStruct((B, PW), jnp.float32),
        in_specs=[pl.BlockSpec(memory_space=pltpu.MemorySpace.VMEM),
                  pl.BlockSpec(memory_space=pltpu.MemorySpace.VMEM),
                  pl.BlockSpec(memory_space=pltpu.MemorySpace.VMEM)],
        out_specs=pl.BlockSpec(memory_space=pltpu.MemorySpace.VMEM),
    )(mem, ego_pad, slab)

    outputs_ego_trajs = out_full[:, :out_dim]
    outputs_ego_trajs_2 = outputs_ego_trajs.reshape(B, fut_steps, 5)
    return outputs_ego_trajs, outputs_ego_trajs_2


def planner_reference(params, bev_feature, ego_state, *, num_heads=4, fut_steps=2):
    """Pure-JAX reference with identical math (per-sample loop)."""
    B, T, C, H, W = bev_feature.shape
    D = C
    S = H * W
    hd = D // num_heads
    scale = 1.0 / (hd ** 0.5)
    mem = bev_feature[:, 0].reshape(B, C, S).transpose(0, 2, 1)
    outs = []
    for b in range(B):
        m = mem[b]
        q = params["eq"]
        qkv_s = q @ params["wqkv_s"] + params["bqkv_s"]
        sa = qkv_s[:, 2 * D:3 * D] @ params["wo_s"] + params["bo_s"]
        x = _layernorm(q + sa, params["ln"][0:1], params["ln"][1:2])

        q_c = x @ params["wqkv_c"][:, :D] + params["bqkv_c"][:, :D]
        k_c = m @ params["wqkv_c"][:, D:2 * D] + params["bqkv_c"][:, D:2 * D]
        v_c = m @ params["wqkv_c"][:, 2 * D:] + params["bqkv_c"][:, 2 * D:]
        heads = []
        for h in range(num_heads):
            sl = slice(h * hd, (h + 1) * hd)
            s = jnp.sum(k_c[:, sl] * q_c[:, sl], axis=-1, keepdims=True) * scale
            p = jax.nn.softmax(s, axis=0)
            heads.append(jnp.sum(p * v_c[:, sl], axis=0, keepdims=True))
        attn = jnp.concatenate(heads, axis=-1)
        ca = attn @ params["wo_c"] + params["bo_c"]
        x = _layernorm(x + ca, params["ln"][2:3], params["ln"][3:4])

        ff = jax.nn.relu(x @ params["w1"] + params["b1"]) @ params["w2"] + params["b2"]
        x = _layernorm(x + ff, params["ln"][4:5], params["ln"][5:6])

        es = ego_state[b:b + 1]
        hh = jax.nn.relu(x @ params["wa_x"] + es @ params["wa_e"] + params["ba"])
        hh = jax.nn.relu(hh @ params["wb"] + params["bb"])
        outs.append(hh @ params["wc"] + params["bc"])
    out = jnp.concatenate(outs, axis=0)
    return out, out.reshape(B, fut_steps, 5)


def init_params(key, *, D=32, Ce=12, ff=64, fut_steps=2):
    out_dim = fut_steps * 5
    ks = jax.random.split(key, 24)

    def w(k, shape, scale=0.05):
        return (scale * jax.random.normal(k, shape)).astype(jnp.float32)

    p = {}
    p["eq"] = w(ks[0], (1, D))
    p["wqkv_s"] = w(ks[1], (D, 3 * D)); p["bqkv_s"] = w(ks[2], (1, 3 * D))
    p["wo_s"] = w(ks[3], (D, D));       p["bo_s"] = w(ks[4], (1, D))
    p["wqkv_c"] = w(ks[5], (D, 3 * D)); p["bqkv_c"] = w(ks[6], (1, 3 * D))
    p["wo_c"] = w(ks[7], (D, D));       p["bo_c"] = w(ks[8], (1, D))
    gammas = 1.0 + 0.01 * jax.random.normal(ks[9], (3, D))
    betas = 0.01 * jax.random.normal(ks[10], (3, D))
    p["ln"] = jnp.stack(
        [gammas[0], betas[0], gammas[1], betas[1], gammas[2], betas[2]], axis=0
    ).astype(jnp.float32)
    p["w1"] = w(ks[11], (D, ff)); p["b1"] = w(ks[12], (1, ff))
    p["w2"] = w(ks[13], (ff, D)); p["b2"] = w(ks[14], (1, D))
    p["wa_x"] = w(ks[15], (D, D)); p["wa_e"] = w(ks[16], (Ce, D)); p["ba"] = w(ks[17], (1, D))
    p["wb"] = w(ks[18], (D, D));   p["bb"] = w(ks[19], (1, D))
    p["wc"] = w(ks[20], (D, out_dim)); p["bc"] = w(ks[21], (1, out_dim))
    return p


if __name__ == "__main__":
    key = jax.random.PRNGKey(0)
    kp, kb, ke = jax.random.split(key, 3)

    # small shapes consistent with the module: embed_dims = C = 32, H=W=8, C_e=12
    B, T, C, H, W = 2, 2, 32, 8, 8
    Ce = 12
    fut_steps = 2
    num_heads = 4

    params = init_params(kp, D=C, Ce=Ce, ff=2 * C, fut_steps=fut_steps)
    bev_feature = jax.random.normal(kb, (B, T, C, H, W), dtype=jnp.float32)
    ego_state = jax.random.normal(ke, (B, Ce), dtype=jnp.float32)

    trajs, trajs2 = planner_forward(params, bev_feature, ego_state,
                                    num_heads=num_heads, fut_steps=fut_steps)
    jax.block_until_ready((trajs, trajs2))

    ref, ref2 = planner_reference(params, bev_feature, ego_state,
                                  num_heads=num_heads, fut_steps=fut_steps)

    assert trajs.shape == (B, fut_steps * 5), trajs.shape
    assert trajs2.shape == (B, fut_steps, 5), trajs2.shape
    assert jnp.allclose(trajs, ref, atol=2e-3, rtol=2e-3), "mismatch vs JAX reference"
    assert jnp.allclose(trajs2, ref2, atol=2e-3, rtol=2e-3), "mismatch vs JAX reference"

    print("KERNEL_OK")
</pallas_src>

<mosaic_0001>
module attributes {stable_mosaic.version = 11 : i64} {
  func.func @planner_kernel(%arg0: memref<128x32xf32, #tpu.memory_space<vmem>>, %arg1: memref<2x16xf32, #tpu.memory_space<vmem>>, %arg2: memref<288x128xf32, #tpu.memory_space<vmem>>, %arg3: memref<2x128xf32, #tpu.memory_space<vmem>>) attributes {dimension_semantics = [], scalar_prefetch = 0 : i64, scratch_operands = 0 : i64, tpu.core_type = #tpu.core_type<tc>} {
    %c0 = arith.constant 0 : index
    %c0_0 = arith.constant 0 : index
    %0 = vector.load %arg0[%c0, %c0_0] : memref<128x32xf32, #tpu.memory_space<vmem>>, vector<128x32xf32>
    %c0_1 = arith.constant 0 : index
    %c0_2 = arith.constant 0 : index
    %1 = vector.load %arg2[%c0_1, %c0_2] : memref<288x128xf32, #tpu.memory_space<vmem>>, vector<32x64xf32>
    %c272 = arith.constant 272 : index
    %c0_3 = arith.constant 0 : index
    %2 = vector.load %arg2[%c272, %c0_3] : memref<288x128xf32, #tpu.memory_space<vmem>>, vector<1x64xf32>
    %cst = arith.constant dense<0.000000e+00> : vector<128x64xf32>
    %3 = tpu.matmul %0, %1, %cst {dimension_numbers = #tpu.dot_dimension_numbers<[1], [0], [0], [1], [0, 0, 1, 1], [], []>} : vector<128x32xf32>, vector<32x64xf32>, vector<128x64xf32> -> vector<128x64xf32>
    %4 = vector.broadcast %2 : vector<1x64xf32> to vector<128x64xf32>
    %5 = arith.addf %3, %4 : vector<128x64xf32>
    %6 = vector.extract_strided_slice %5 {offsets = [0, 0], sizes = [128, 32], strides = [1, 1]} : vector<128x64xf32> to vector<128x32xf32>
    %7 = vector.shape_cast %6 : vector<128x32xf32> to vector<2x64x32xf32>
    %8 = vector.extract_strided_slice %5 {offsets = [0, 32], sizes = [128, 32], strides = [1, 1]} : vector<128x64xf32> to vector<128x32xf32>
    %9 = vector.shape_cast %8 : vector<128x32xf32> to vector<2x64x32xf32>
    %cst_4 = arith.constant dense<0xFF800000> : vector<2x32xf32>
    %10 = vector.multi_reduction <maximumf>, %7, %cst_4 [1] : vector<2x64x32xf32> to vector<2x32xf32>
    %11 = vector.shape_cast %10 : vector<2x32xf32> to vector<2x1x32xf32>
    %12 = vector.broadcast %11 : vector<2x1x32xf32> to vector<2x64x32xf32>
    %13 = arith.subf %7, %12 : vector<2x64x32xf32>
    %14 = math.exp %13 : vector<2x64x32xf32>
    %15 = arith.mulf %14, %9 : vector<2x64x32xf32>
    %cst_5 = arith.constant dense<0.000000e+00> : vector<2x32xf32>
    %16 = vector.multi_reduction <add>, %15, %cst_5 [1] : vector<2x64x32xf32> to vector<2x32xf32>
    %cst_6 = arith.constant dense<0.000000e+00> : vector<2x32xf32>
    %17 = vector.multi_reduction <add>, %14, %cst_6 [1] : vector<2x64x32xf32> to vector<2x32xf32>
    %18 = arith.divf %16, %17 : vector<2x32xf32>
    %c64 = arith.constant 64 : index
    %c0_7 = arith.constant 0 : index
    %19 = vector.load %arg2[%c64, %c0_7] : memref<288x128xf32, #tpu.memory_space<vmem>>, vector<32x32xf32>
    %c273 = arith.constant 273 : index
    %c0_8 = arith.constant 0 : index
    %20 = vector.load %arg2[%c273, %c0_8] : memref<288x128xf32, #tpu.memory_space<vmem>>, vector<1x32xf32>
    %c283 = arith.constant 283 : index
    %c0_9 = arith.constant 0 : index
    %21 = vector.load %arg2[%c283, %c0_9] : memref<288x128xf32, #tpu.memory_space<vmem>>, vector<1x32xf32>
    %c274 = arith.constant 274 : index
    %c0_10 = arith.constant 0 : index
    %22 = vector.load %arg2[%c274, %c0_10] : memref<288x128xf32, #tpu.memory_space<vmem>>, vector<1x32xf32>
    %c275 = arith.constant 275 : index
    %c0_11 = arith.constant 0 : index
    %23 = vector.load %arg2[%c275, %c0_11] : memref<288x128xf32, #tpu.memory_space<vmem>>, vector<1x32xf32>
    %cst_12 = arith.constant dense<0.000000e+00> : vector<2x32xf32>
    %24 = tpu.matmul %18, %19, %cst_12 {dimension_numbers = #tpu.dot_dimension_numbers<[1], [0], [0], [1], [0, 0, 1, 1], [], []>} : vector<2x32xf32>, vector<32x32xf32>, vector<2x32xf32> -> vector<2x32xf32>
    %25 = vector.broadcast %20 : vector<1x32xf32> to vector<2x32xf32>
    %26 = arith.addf %24, %25 : vector<2x32xf32>
    %27 = vector.broadcast %21 : vector<1x32xf32> to vector<2x32xf32>
    %28 = arith.addf %27, %26 : vector<2x32xf32>
    %cst_13 = arith.constant dense<0.000000e+00> : vector<2xf32>
    %29 = vector.multi_reduction <add>, %28, %cst_13 [1] : vector<2x32xf32> to vector<2xf32>
    %30 = vector.shape_cast %29 : vector<2xf32> to vector<2x1xf32>
    %cst_14 = arith.constant 3.200000e+01 : f32
    %31 = vector.broadcast %cst_14 : f32 to vector<2x1xf32>
    %32 = arith.divf %30, %31 : vector<2x1xf32>
    %33 = vector.broadcast %32 : vector<2x1xf32> to vector<2x32xf32>
    %34 = arith.subf %28, %33 : vector<2x32xf32>
    %35 = arith.mulf %34, %34 : vector<2x32xf32>
    %cst_15 = arith.constant dense<0.000000e+00> : vector<2xf32>
    %36 = vector.multi_reduction <add>, %35, %cst_15 [1] : vector<2x32xf32> to vector<2xf32>
    %37 = vector.shape_cast %36 : vector<2xf32> to vector<2x1xf32>
    %cst_16 = arith.constant 3.200000e+01 : f32
    %38 = vector.broadcast %cst_16 : f32 to vector<2x1xf32>
    %39 = arith.divf %37, %38 : vector<2x1xf32>
    %40 = vector.broadcast %32 : vector<2x1xf32> to vector<2x32xf32>
    %41 = arith.subf %28, %40 : vector<2x32xf32>
    %cst_17 = arith.constant 9.99999974E-6 : f32
    %42 = vector.broadcast %cst_17 : f32 to vector<2x1xf32>
    %43 = arith.addf %39, %42 : vector<2x1xf32>
    %44 = math.rsqrt %43 : vector<2x1xf32>
    %45 = vector.broadcast %44 : vector<2x1xf32> to vector<2x32xf32>
    %46 = arith.mulf %41, %45 : vector<2x32xf32>
    %47 = vector.broadcast %22 : vector<1x32xf32> to vector<2x32xf32>
    %48 = arith.mulf %46, %47 : vector<2x32xf32>
    %49 = vector.broadcast %23 : vector<1x32xf32> to vector<2x32xf32>
    %50 = arith.addf %48, %49 : vector<2x32xf32>
    %c32 = arith.constant 32 : index
    %c0_18 = arith.constant 0 : index
    %51 = vector.load %arg2[%c32, %c0_18] : memref<288x128xf32, #tpu.memory_space<vmem>>, vector<32x64xf32>
    %c278 = arith.constant 278 : index
    %c0_19 = arith.constant 0 : index
    %52 = vector.load %arg2[%c278, %c0_19] : memref<288x128xf32, #tpu.memory_space<vmem>>, vector<1x64xf32>
    %c192 = arith.constant 192 : index
    %c0_20 = arith.constant 0 : index
    %53 = vector.load %arg2[%c192, %c0_20] : memref<288x128xf32, #tpu.memory_space<vmem>>, vector<64x32xf32>
    %c279 = arith.constant 279 : index
    %c0_21 = arith.constant 0 : index
    %54 = vector.load %arg2[%c279, %c0_21] : memref<288x128xf32, #tpu.memory_space<vmem>>, vector<1x32xf32>
    %c276 = arith.constant 276 : index
    %c0_22 = arith.constant 0 : index
    %55 = vector.load %arg2[%c276, %c0_22] : memref<288x128xf32, #tpu.memory_space<vmem>>, vector<1x32xf32>
    %c277 = arith.constant 277 : index
    %c0_23 = arith.constant 0 : index
    %56 = vector.load %arg2[%c277, %c0_23] : memref<288x128xf32, #tpu.memory_space<vmem>>, vector<1x32xf32>
    %cst_24 = arith.constant dense<0.000000e+00> : vector<2x64xf32>
    %57 = tpu.matmul %50, %51, %cst_24 {dimension_numbers = #tpu.dot_dimension_numbers<[1], [0], [0], [1], [0, 0, 1, 1], [], []>} : vector<2x32xf32>, vector<32x64xf32>, vector<2x64xf32> -> vector<2x64xf32>
    %58 = vector.broadcast %52 : vector<1x64xf32> to vector<2x64xf32>
    %59 = arith.addf %57, %58 : vector<2x64xf32>
    %cst_25 = arith.constant 0.000000e+00 : f32
    %60 = vector.broadcast %cst_25 : f32 to vector<2x64xf32>
    %61 = arith.maximumf %59, %60 : vector<2x64xf32>
    %cst_26 = arith.constant dense<0.000000e+00> : vector<2x32xf32>
    %62 = tpu.matmul %61, %53, %cst_26 {dimension_numbers = #tpu.dot_dimension_numbers<[1], [0], [0], [1], [0, 0, 1, 1], [], []>} : vector<2x64xf32>, vector<64x32xf32>, vector<2x32xf32> -> vector<2x32xf32>
    %63 = vector.broadcast %54 : vector<1x32xf32> to vector<2x32xf32>
    %64 = arith.addf %62, %63 : vector<2x32xf32>
    %65 = arith.addf %50, %64 : vector<2x32xf32>
    %cst_27 = arith.constant dense<0.000000e+00> : vector<2xf32>
    %66 = vector.multi_reduction <add>, %65, %cst_27 [1] : vector<2x32xf32> to vector<2xf32>
    %67 = vector.shape_cast %66 : vector<2xf32> to vector<2x1xf32>
    %cst_28 = arith.constant 3.200000e+01 : f32
    %68 = vector.broadcast %cst_28 : f32 to vector<2x1xf32>
    %69 = arith.divf %67, %68 : vector<2x1xf32>
    %70 = vector.broadcast %69 : vector<2x1xf32> to vector<2x32xf32>
    %71 = arith.subf %65, %70 : vector<2x32xf32>
    %72 = arith.mulf %71, %71 : vector<2x32xf32>
    %cst_29 = arith.constant dense<0.000000e+00> : vector<2xf32>
    %73 = vector.multi_reduction <add>, %72, %cst_29 [1] : vector<2x32xf32> to vector<2xf32>
    %74 = vector.shape_cast %73 : vector<2xf32> to vector<2x1xf32>
    %cst_30 = arith.constant 3.200000e+01 : f32
    %75 = vector.broadcast %cst_30 : f32 to vector<2x1xf32>
    %76 = arith.divf %74, %75 : vector<2x1xf32>
    %77 = vector.broadcast %69 : vector<2x1xf32> to vector<2x32xf32>
    %78 = arith.subf %65, %77 : vector<2x32xf32>
    %cst_31 = arith.constant 9.99999974E-6 : f32
    %79 = vector.broadcast %cst_31 : f32 to vector<2x1xf32>
    %80 = arith.addf %76, %79 : vector<2x1xf32>
    %81 = math.rsqrt %80 : vector<2x1xf32>
    %82 = vector.broadcast %81 : vector<2x1xf32> to vector<2x32xf32>
    %83 = arith.mulf %78, %82 : vector<2x32xf32>
    %84 = vector.broadcast %55 : vector<1x32xf32> to vector<2x32xf32>
    %85 = arith.mulf %83, %84 : vector<2x32xf32>
    %86 = vector.broadcast %56 : vector<1x32xf32> to vector<2x32xf32>
    %87 = arith.addf %85, %86 : vector<2x32xf32>
    %c0_32 = arith.constant 0 : index
    %c0_33 = arith.constant 0 : index
    %88 = vector.load %arg1[%c0_32, %c0_33] : memref<2x16xf32, #tpu.memory_space<vmem>>, vector<2x16xf32>
    %c96 = arith.constant 96 : index
    %c0_34 = arith.constant 0 : index
    %89 = vector.load %arg2[%c96, %c0_34] : memref<288x128xf32, #tpu.memory_space<vmem>>, vector<32x32xf32>
    %c256 = arith.constant 256 : index
    %c0_35 = arith.constant 0 : index
    %90 = vector.load %arg2[%c256, %c0_35] : memref<288x128xf32, #tpu.memory_space<vmem>>, vector<16x32xf32>
    %c280 = arith.constant 280 : index
    %c0_36 = arith.constant 0 : index
    %91 = vector.load %arg2[%c280, %c0_36] : memref<288x128xf32, #tpu.memory_space<vmem>>, vector<1x32xf32>
    %c128 = arith.constant 128 : index
    %c0_37 = arith.constant 0 : index
    %92 = vector.load %arg2[%c128, %c0_37] : memref<288x128xf32, #tpu.memory_space<vmem>>, vector<32x32xf32>
    %c281 = arith.constant 281 : index
    %c0_38 = arith.constant 0 : index
    %93 = vector.load %arg2[%c281, %c0_38] : memref<288x128xf32, #tpu.memory_space<vmem>>, vector<1x32xf32>
    %c160 = arith.constant 160 : index
    %c0_39 = arith.constant 0 : index
    %94 = vector.load %arg2[%c160, %c0_39] : memref<288x128xf32, #tpu.memory_space<vmem>>, vector<32x128xf32>
    %c282 = arith.constant 282 : index
    %c0_40 = arith.constant 0 : index
    %95 = vector.load %arg2[%c282, %c0_40] : memref<288x128xf32, #tpu.memory_space<vmem>>, vector<1x128xf32>
    %cst_41 = arith.constant dense<0.000000e+00> : vector<2x32xf32>
    %96 = tpu.matmul %87, %89, %cst_41 {dimension_numbers = #tpu.dot_dimension_numbers<[1], [0], [0], [1], [0, 0, 1, 1], [], []>} : vector<2x32xf32>, vector<32x32xf32>, vector<2x32xf32> -> vector<2x32xf32>
    %cst_42 = arith.constant dense<0.000000e+00> : vector<2x32xf32>
    %97 = tpu.matmul %88, %90, %cst_42 {dimension_numbers = #tpu.dot_dimension_numbers<[1], [0], [0], [1], [0, 0, 1, 1], [], []>} : vector<2x16xf32>, vector<16x32xf32>, vector<2x32xf32> -> vector<2x32xf32>
    %98 = arith.addf %96, %97 : vector<2x32xf32>
    %99 = vector.broadcast %91 : vector<1x32xf32> to vector<2x32xf32>
    %100 = arith.addf %98, %99 : vector<2x32xf32>
    %cst_43 = arith.constant 0.000000e+00 : f32
    %101 = vector.broadcast %cst_43 : f32 to vector<2x32xf32>
    %102 = arith.maximumf %100, %101 : vector<2x32xf32>
    %cst_44 = arith.constant dense<0.000000e+00> : vector<2x32xf32>
    %103 = tpu.matmul %102, %92, %cst_44 {dimension_numbers = #tpu.dot_dimension_numbers<[1], [0], [0], [1], [0, 0, 1, 1], [], []>} : vector<2x32xf32>, vector<32x32xf32>, vector<2x32xf32> -> vector<2x32xf32>
    %104 = vector.broadcast %93 : vector<1x32xf32> to vector<2x32xf32>
    %105 = arith.addf %103, %104 : vector<2x32xf32>
    %cst_45 = arith.constant 0.000000e+00 : f32
    %106 = vector.broadcast %cst_45 : f32 to vector<2x32xf32>
    %107 = arith.maximumf %105, %106 : vector<2x32xf32>
    %cst_46 = arith.constant dense<0.000000e+00> : vector<2x128xf32>
    %108 = tpu.matmul %107, %94, %cst_46 {dimension_numbers = #tpu.dot_dimension_numbers<[1], [0], [0], [1], [0, 0, 1, 1], [], []>} : vector<2x32xf32>, vector<32x128xf32>, vector<2x128xf32> -> vector<2x128xf32>
    %109 = vector.broadcast %95 : vector<1x128xf32> to vector<2x128xf32>
    %110 = arith.addf %108, %109 : vector<2x128xf32>
    %c0_47 = arith.constant 0 : index
    %c0_48 = arith.constant 0 : index
    %111 = vector.load %arg3[%c0_47, %c0_48] : memref<2x128xf32, #tpu.memory_space<vmem>>, vector<2x128xf32>
    tpu.vector_store %arg3[%c0_47, %c0_48], %110 {strides = array<i32>} : memref<2x128xf32, #tpu.memory_space<vmem>>, vector<2x128xf32>,
    return
  }
}

</mosaic_0001>

<llo_original>
// kernel: tpu_custom_call.1
$region0: #{tpu_custom_call.1}
  #allocation0 [shape = 'u32[]', space=smem, size = 0x4, offset = 0x4, fixed_abs, tag = 'smem constant byte address 0x4 - core index']
  #allocation1 [shape = 'u32[144,128]{1,0:T(1,128)}', space=vmem, size = 0x12000, scoped, tag = 'internal scratch']
  %s0 = inlined_call_operand.vmem [shape: f32[128,32], index: 0, kind: input, shape index: {}]
  %s1 = inlined_call_operand.vmem [shape: f32[2,16], index: 1, kind: input, shape index: {}]
  %s2 = inlined_call_operand.hbm [shape: f32[288,128], index: 2, kind: input, shape index: {}]
  %s3 = inlined_call_operand.hbm [shape: f32[2,128], index: 3, kind: output, shape index: {}]
  %s4 = sld [smem:[#allocation0]]
  $region26: #{tpu_custom_call.1} parent=0
    _
  %s6 = ssub.s32 1, %s4
  %s7 = scalar_select 0, %s6, %s4
  $region1: #{tpu_custom_call.1} parent=0
    #allocation2 [shape = 'u8[147456]{0}', space=vmem, size = 0x24000, scoped, tag = 'input window, operand 2, single buffered']
    #allocation3 [shape = 's32[1]{0}', space=sflag, size = 0x4, scoped, tag = 'scoped memory for tpu_custom_call.1']
    #allocation4 [shape = 's32[1]{0}', space=sflag, size = 0x4, scoped, tag = 'scoped memory for tpu_custom_call.1']
    #allocation5 [shape = 'u8[1024]{0}', space=vmem, size = 0x400, scoped, tag = 'output window, operand 0, single buffered']
    %8 = vsyncpa [#allocation3], 0
    %9 = vsyncpa [#allocation4], 0
    // Predicated region
    $region2: #{tpu_custom_call.1} parent=1 // pred_check
      _
    $region3: #{tpu_custom_call.1} parent=1 // pred_check_branch
      %11 = sbr.rel (0) target = $region5
    $region4: #{tpu_custom_call.1} parent=1 // pred_region
      _
    $region5: #{tpu_custom_call.1} parent=1 // pred_fallthru
      _
    // Predicated region
    $region6: #{tpu_custom_call.1} parent=1 // pred_check
      _
    $region7: #{tpu_custom_call.1} parent=1 // pred_check_branch
      %13 = sbr.rel (0) target = $region9
    $region8: #{tpu_custom_call.1} parent=1 // pred_region
      _
    $region9: #{tpu_custom_call.1} parent=1 // pred_fallthru
      _
    // Predicated region
    $region10: #{tpu_custom_call.1} parent=1 // pred_check
      _
    $region11: #{tpu_custom_call.1} parent=1 // pred_check_branch
      %15 = sbr.rel (0) target = $region13
    $region12: #{tpu_custom_call.1} parent=1 // pred_region
      %s17 = ssub.s32 4608, 4608
      %18 = vsyncadd [#allocation3], %s17
      %s19 = sshll.u32 [#allocation2], 4
      %s20 = int_to_ptr.vmem [resolvable:$true] %s19
      %25 = dma.hbm_to_vmem [thread:$0]  %s2, 4608, %s20, [#allocation3], 128, 128, 8
    $region13: #{tpu_custom_call.1} parent=1 // pred_fallthru
      _
    // Predicated region
    $region14: #{tpu_custom_call.1} parent=1 // pred_check
      _
    $region15: #{tpu_custom_call.1} parent=1 // pred_check_branch
      %27 = sbr.rel (0) target = $region17
    $region16: #{tpu_custom_call.1} parent=1 // pred_region
      %28 = dma.done [#allocation3], 4608
    $region17: #{tpu_custom_call.1} parent=1 // pred_fallthru
      _
    %v29 = vld [vmem:[%s0] sm:$0xff]
    %v30 = vld [vmem:[%s0 + $0x8] sm:$0xff]
    %v31 = vld [vmem:[%s0 + $0x10] sm:$0xff]
    %v32 = vld [vmem:[%s0 + $0x18] sm:$0xff]
    %v33 = vld [vmem:[%s0 + $0x20] sm:$0xff]
    %v34 = vld [vmem:[%s0 + $0x28] sm:$0xff]
    %v35 = vld [vmem:[%s0 + $0x30] sm:$0xff]
    %v36 = vld [vmem:[%s0 + $0x38] sm:$0xff]
    %v37 = vld [vmem:[%s0 + $0x40] sm:$0xff]
    %v38 = vld [vmem:[%s0 + $0x48] sm:$0xff]
    %v39 = vld [vmem:[%s0 + $0x50] sm:$0xff]
    %v40 = vld [vmem:[%s0 + $0x58] sm:$0xff]
    %v41 = vld [vmem:[%s0 + $0x60] sm:$0xff]
    %v42 = vld [vmem:[%s0 + $0x68] sm:$0xff]
    %v43 = vld [vmem:[%s0 + $0x70] sm:$0xff]
    %v44 = vld [vmem:[%s0 + $0x78] sm:$0xff]
    %v45 = vld [vmem:[#allocation2] sm:$0xff]
    %v46 = vld [vmem:[#allocation2 + $0x8] sm:$0xff]
    %v47 = vld [vmem:[#allocation2 + $0x10] sm:$0xff]
    %v48 = vld [vmem:[#allocation2 + $0x18] sm:$0xff]
    %v49 = vld [vmem:[#allocation2 + $0x110] sm:$0x1]
    %v50 = vlaneseq
    %v51 = vshrl.u32 %v50, 7
    %v52 = vsub.s32 0, %v51
    %v53 = vrot.slane %v49, %v52
    %vm54 = vcmask 261120
    %v56 = vsel %vm54, %v29, 0
    %v59 = vsel %vm54, %v30, 0
    %v62 = vsel %vm54, %v31, 0
    %v65 = vsel %vm54, %v32, 0
    %v68 = vsel %vm54, %v33, 0
    %v71 = vsel %vm54, %v34, 0
    %v74 = vsel %vm54, %v35, 0
    %v77 = vsel %vm54, %v36, 0
    %v80 = vsel %vm54, %v37, 0
    %v83 = vsel %vm54, %v38, 0
    %v86 = vsel %vm54, %v39, 0
    %v89 = vsel %vm54, %v40, 0
    %v92 = vsel %vm54, %v41, 0
    %v95 = vsel %vm54, %v42, 0
    %v98 = vsel %vm54, %v43, 0
    %v101 = vsel %vm54, %v44, 0
    %103 = vmatprep.subr.mxu0 0.0
    %104 = vmatpush1.msra.mxu0 %v45
    %105 = vmatprep.subr.mxu0 0.0
    %106 = vmatpush1.msra.mxu0 %v46
    %107 = vmatprep.subr.mxu0 0.0
    %108 = vmatpush1.msra.mxu0 %v47
    %109 = vmatprep.subr.mxu0 0.0
    %110 = vmatpush1.msra.mxu0 %v48
    %111 = vmatprep.subr.mxu0 0.0
    %112 = vmatpush1.msra.mxu0 0.0
    %113 = vmatprep.subr.mxu0 0.0
    %114 = vmatpush1.msra.mxu0 0.0
    %115 = vmatprep.subr.mxu0 0.0
    %116 = vmatpush1.msra.mxu0 0.0
    %117 = vmatprep.subr.mxu0 0.0
    %118 = vmatpush1.msra.mxu0 0.0
    %119 = vmatprep.subr.mxu0 0.0
    %120 = vmatpush1.msra.mxu0 0.0
    %121 = vmatprep.subr.mxu0 0.0
    %122 = vmatpush1.msra.mxu0 0.0
    %123 = vmatprep.subr.mxu0 0.0
    %124 = vmatpush1.msra.mxu0 0.0
    %125 = vmatprep.subr.mxu0 0.0
    %126 = vmatpush1.msra.mxu0 0.0
    %127 = vmatprep.subr.mxu0 0.0
    %128 = vmatpush1.msra.mxu0 0.0
    %129 = vmatprep.subr.mxu0 0.0
    %130 = vmatpush1.msra.mxu0 0.0
    %131 = vmatprep.subr.mxu0 0.0
    %132 = vmatpush1.msra.mxu0 0.0
    %133 = vmatprep.subr.mxu0 0.0
    %134 = vmatpush1.msra.mxu0 0.0
    %135 = vmatprep.subr.mxu0 0.0
    %136 = vmatpush1.msra.mxu0 0.0
    %137 = vmatprep.subr.mxu0 0.0
    %138 = vmatpush1.msra.mxu0 0.0
    %139 = vmatprep.subr.mxu0 0.0
    %140 = vmatpush1.msra.mxu0 0.0
    %141 = vmatprep.subr.mxu0 0.0
    %142 = vmatpush1.msra.mxu0 0.0
    %143 = vmatprep.subr.mxu0 0.0
    %144 = vmatpush1.msra.mxu0 0.0
    %145 = vmatprep.subr.mxu0 0.0
    %146 = vmatpush1.msra.mxu0 0.0
    %147 = vmatprep.subr.mxu0 0.0
    %148 = vmatpush1.msra.mxu0 0.0
    %149 = vmatprep.subr.mxu0 0.0
    %150 = vmatpush1.msra.mxu0 0.0
    %151 = vmatprep.subr.mxu0 0.0
    %152 = vmatpush1.msra.mxu0 0.0
    %153 = vmatprep.subr.mxu0 0.0
    %154 = vmatpush1.msra.mxu0 0.0
    %155 = vmatprep.subr.mxu0 0.0
    %156 = vmatpush1.msra.mxu0 0.0
    %157 = vmatprep.subr.mxu0 0.0
    %158 = vmatpush1.msra.mxu0 0.0
    %159 = vmatprep.subr.mxu0 0.0
    %160 = vmatpush1.msra.mxu0 0.0
    %161 = vmatprep.subr.mxu0 0.0
    %162 = vmatpush1.msra.mxu0 0.0
    %163 = vmatprep.subr.mxu0 0.0
    %164 = vmatpush1.msra.mxu0 0.0
    %165 = vmatprep.subr.mxu0 0.0
    %166 = vmatpush1.msra.mxu0 0.0
    %167 = vmatprep.mubr.f32.mxu0 0.0
    %168 = vmatmul.mubr.f32.gmra.mrb[0].mxu0 %v56
    %v169 = vpop.f32.mrb[0].mxu0
    %v170 = vadd.f32 %v53, %v169
    %v171 = vpop.f32.mrb[0].mxu0
    %172 = vmatprep.mubr.f32.mxu0 0.0
    %173 = vmatmul.mubr.f32.gmra.mrb[0].mxu0 %v59
    %v174 = vpop.f32.mrb[0].mxu0
    %v175 = vadd.f32 %v53, %v174
    %v176 = vpop.f32.mrb[0].mxu0
    %177 = vmatprep.mubr.f32.mxu0 0.0
    %178 = vmatmul.mubr.f32.gmra.mrb[0].mxu0 %v62
    %v179 = vpop.f32.mrb[0].mxu0
    %v180 = vadd.f32 %v53, %v179
    %v181 = vpop.f32.mrb[0].mxu0
    %182 = vmatprep.mubr.f32.mxu0 0.0
    %183 = vmatmul.mubr.f32.gmra.mrb[0].mxu0 %v65
    %v184 = vpop.f32.mrb[0].mxu0
    %v185 = vadd.f32 %v53, %v184
    %v186 = vpop.f32.mrb[0].mxu0
    %187 = vmatprep.mubr.f32.mxu0 0.0
    %188 = vmatmul.mubr.f32.gmra.mrb[0].mxu0 %v68
    %v189 = vpop.f32.mrb[0].mxu0
    %v190 = vadd.f32 %v53, %v189
    %v191 = vpop.f32.mrb[0].mxu0
    %192 = vmatprep.mubr.f32.mxu0 0.0
    %193 = vmatmul.mubr.f32.gmra.mrb[0].mxu0 %v71
    %v194 = vpop.f32.mrb[0].mxu0
    %v195 = vadd.f32 %v53, %v194
    %v196 = vpop.f32.mrb[0].mxu0
    %197 = vmatprep.mubr.f32.mxu0 0.0
    %198 = vmatmul.mubr.f32.gmra.mrb[0].mxu0 %v74
    %v199 = vpop.f32.mrb[0].mxu0
    %v200 = vadd.f32 %v53, %v199
    %v201 = vpop.f32.mrb[0].mxu0
    %202 = vmatprep.mubr.f32.mxu0 0.0
    %203 = vmatmul.mubr.f32.gmra.mrb[0].mxu0 %v77
    %v204 = vpop.f32.mrb[0].mxu0
    %v205 = vadd.f32 %v53, %v204
    %v206 = vpop.f32.mrb[0].mxu0
    %207 = vmatprep.mubr.f32.mxu0 0.0
    %208 = vmatmul.mubr.f32.gmra.mrb[0].mxu0 %v80
    %v209 = vpop.f32.mrb[0].mxu0
    %v210 = vadd.f32 %v53, %v209
    %v211 = vpop.f32.mrb[0].mxu0
    %212 = vmatprep.mubr.f32.mxu0 0.0
    %213 = vmatmul.mubr.f32.gmra.mrb[0].mxu0 %v83
    %v214 = vpop.f32.mrb[0].mxu0
    %v215 = vadd.f32 %v53, %v214
    %v216 = vpop.f32.mrb[0].mxu0
    %217 = vmatprep.mubr.f32.mxu0 0.0
    %218 = vmatmul.mubr.f32.gmra.mrb[0].mxu0 %v86
    %v219 = vpop.f32.mrb[0].mxu0
    %v220 = vadd.f32 %v53, %v219
    %v221 = vpop.f32.mrb[0].mxu0
    %222 = vmatprep.mubr.f32.mxu0 0.0
    %223 = vmatmul.mubr.f32.gmra.mrb[0].mxu0 %v89
    %v224 = vpop.f32.mrb[0].mxu0
    %v225 = vadd.f32 %v53, %v224
    %v226 = vpop.f32.mrb[0].mxu0
    %227 = vmatprep.mubr.f32.mxu0 0.0
    %228 = vmatmul.mubr.f32.gmra.mrb[0].mxu0 %v92
    %v229 = vpop.f32.mrb[0].mxu0
    %v230 = vadd.f32 %v53, %v229
    %v231 = vpop.f32.mrb[0].mxu0
    %232 = vmatprep.mubr.f32.mxu0 0.0
    %233 = vmatmul.mubr.f32.gmra.mrb[0].mxu0 %v95
    %v234 = vpop.f32.mrb[0].mxu0
    %v235 = vadd.f32 %v53, %v234
    %v236 = vpop.f32.mrb[0].mxu0
    %237 = vmatprep.mubr.f32.mxu0 0.0
    %238 = vmatmul.mubr.f32.gmra.mrb[0].mxu0 %v98
    %v239 = vpop.f32.mrb[0].mxu0
    %v240 = vadd.f32 %v53, %v239
    %v241 = vpop.f32.mrb[0].mxu0
    %242 = vmatprep.mubr.f32.mxu0 0.0
    %243 = vmatmul.mubr.f32.gmra.mrb[0].mxu0 %v101
    %v244 = vpop.f32.mrb[0].mxu0
    %v245 = vadd.f32 %v53, %v244
    %v246 = vpop.f32.mrb[0].mxu0
    %247 = vdwg.mxu0
    %v248 = vsel %vm54, %v170, -inf
    %v249 = vsel %vm54, %v175, -inf
    %v250 = vsel %vm54, %v180, -inf
    %v251 = vmax.f32 %v248, %v250
    %v252 = vsel %vm54, %v185, -inf
    %v253 = vmax.f32 %v249, %v252
    %v254 = vsel %vm54, %v190, -inf
    %v255 = vmax.f32 %v251, %v254
    %v256 = vsel %vm54, %v195, -inf
    %v257 = vmax.f32 %v253, %v256
    %v258 = vsel %vm54, %v200, -inf
    %v259 = vmax.f32 %v255, %v258
    %v260 = vsel %vm54, %v205, -inf
    %v261 = vmax.f32 %v257, %v260
    %v262 = vmax.f32 %v259, %v261
    %v263 = vrot.slane %v262, 4
    %v264 = vmax.f32 %v262, %v263
    %v265 = vrot.slane %v264, 2
    %v266 = vmax.f32 %v264, %v265
    %v267 = vrot.slane %v266, 1
    %v268 = vmax.f32 %v266, %v267
    %v269 = vsel %vm54, %v210, -inf
    %v270 = vsel %vm54, %v215, -inf
    %v271 = vsel %vm54, %v220, -inf
    %v272 = vmax.f32 %v269, %v271
    %v273 = vsel %vm54, %v225, -inf
    %v274 = vmax.f32 %v270, %v273
    %v275 = vsel %vm54, %v230, -inf
    %v276 = vmax.f32 %v272, %v275
    %v277 = vsel %vm54, %v235, -inf
    %v278 = vmax.f32 %v274, %v277
    %v279 = vsel %vm54, %v240, -inf
    %v280 = vmax.f32 %v276, %v279
    %v281 = vsel %vm54, %v245, -inf
    %v282 = vmax.f32 %v278, %v281
    %v283 = vmax.f32 %v280, %v282
    %v284 = vrot.slane %v283, 4
    %v285 = vmax.f32 %v283, %v284
    %v286 = vrot.slane %v285, 2
    %v287 = vmax.f32 %v285, %v286
    %v288 = vrot.slane %v287, 1
    %v289 = vmax.f32 %v287, %v288
    %v290 = vsub.f32 %v170, %v268
    %v291 = vsub.f32 %v175, %v268
    %v292 = vsub.f32 %v180, %v268
    %v293 = vsub.f32 %v185, %v268
    %v294 = vsub.f32 %v190, %v268
    %v295 = vsub.f32 %v195, %v268
    %v296 = vsub.f32 %v200, %v268
    %v297 = vsub.f32 %v205, %v268
    %v298 = vsub.f32 %v210, %v289
    %v299 = vsub.f32 %v215, %v289
    %v300 = vsub.f32 %v220, %v289
    %v301 = vsub.f32 %v225, %v289
    %v302 = vsub.f32 %v230, %v289
    %v303 = vsub.f32 %v235, %v289
    %v304 = vsub.f32 %v240, %v289
    %v305 = vsub.f32 %v245, %v289
    %v306 = vmul.f32 %v290, 1.442695
    %v307 = vpow.pop %v306
    %v308 = vmul.f32 %v291, 1.442695
    %v309 = vpow.pop %v308
    %v310 = vmul.f32 %v292, 1.442695
    %v311 = vpow.pop %v310
    %v312 = vmul.f32 %v293, 1.442695
    %v313 = vpow.pop %v312
    %v314 = vmul.f32 %v294, 1.442695
    %v315 = vpow.pop %v314
    %v316 = vmul.f32 %v295, 1.442695
    %v317 = vpow.pop %v316
    %v318 = vmul.f32 %v296, 1.442695
    %v319 = vpow.pop %v318
    %v320 = vmul.f32 %v297, 1.442695
    %v321 = vpow.pop %v320
    %v322 = vmul.f32 %v298, 1.442695
    %v323 = vpow.pop %v322
    %v324 = vmul.f32 %v299, 1.442695
    %v325 = vpow.pop %v324
    %v326 = vmul.f32 %v300, 1.442695
    %v327 = vpow.pop %v326
    %v328 = vmul.f32 %v301, 1.442695
    %v329 = vpow.pop %v328
    %v330 = vmul.f32 %v302, 1.442695
    %v331 = vpow.pop %v330
    %v332 = vmul.f32 %v303, 1.442695
    %v333 = vpow.pop %v332
    %v334 = vmul.f32 %v304, 1.442695
    %v335 = vpow.pop %v334
    %v336 = vmul.f32 %v305, 1.442695
    %v337 = vpow.pop %v336
    %354 = vrot.lane.b32.xlu0 %v170, 96
    %v355 = vpop.permute.xlu0 %354
    %356 = vrot.lane.b32.xlu0 %v175, 96
    %v357 = vpop.permute.xlu0 %356
    %358 = vrot.lane.b32.xlu0 %v180, 96
    %v359 = vpop.permute.xlu0 %358
    %360 = vrot.lane.b32.xlu0 %v185, 96
    %v361 = vpop.permute.xlu0 %360
    %362 = vrot.lane.b32.xlu0 %v190, 96
    %v363 = vpop.permute.xlu0 %362
    %364 = vrot.lane.b32.xlu0 %v195, 96
    %v365 = vpop.permute.xlu0 %364
    %366 = vrot.lane.b32.xlu0 %v200, 96
    %v367 = vpop.permute.xlu0 %366
    %368 = vrot.lane.b32.xlu0 %v205, 96
    %v369 = vpop.permute.xlu0 %368
    %370 = vrot.lane.b32.xlu0 %v210, 96
    %v371 = vpop.permute.xlu0 %370
    %372 = vrot.lane.b32.xlu0 %v215, 96
    %v373 = vpop.permute.xlu0 %372
    %374 = vrot.lane.b32.xlu0 %v220, 96
    %v375 = vpop.permute.xlu0 %374
    %376 = vrot.lane.b32.xlu0 %v225, 96
    %v377 = vpop.permute.xlu0 %376
    %378 = vrot.lane.b32.xlu0 %v230, 96
    %v379 = vpop.permute.xlu0 %378
    %380 = vrot.lane.b32.xlu0 %v235, 96
    %v381 = vpop.permute.xlu0 %380
    %382 = vrot.lane.b32.xlu0 %v240, 96
    %v383 = vpop.permute.xlu0 %382
    %384 = vrot.lane.b32.xlu0 %v245, 96
    %v385 = vpop.permute.xlu0 %384
    %v402 = vmul.f32 %v307, %v355
    %v403 = vmul.f32 %v309, %v357
    %v404 = vmul.f32 %v311, %v359
    %v405 = vmul.f32 %v313, %v361
    %v406 = vmul.f32 %v315, %v363
    %v407 = vmul.f32 %v317, %v365
    %v408 = vmul.f32 %v319, %v367
    %v409 = vmul.f32 %v321, %v369
    %v410 = vmul.f32 %v323, %v371
    %v411 = vmul.f32 %v325, %v373
    %v412 = vmul.f32 %v327, %v375
    %v413 = vmul.f32 %v329, %v377
    %v414 = vmul.f32 %v331, %v379
    %v415 = vmul.f32 %v333, %v381
    %v416 = vmul.f32 %v335, %v383
    %v417 = vmul.f32 %v337, %v385
    %v418 = vsel %vm54, %v402, 0.0
    %v419 = vsel %vm54, %v403, 0.0
    %v420 = vadd.f32 %v418, %v419
    %v421 = vsel %vm54, %v404, 0.0
    %v422 = vadd.f32 %v420, %v421
    %v423 = vsel %vm54, %v405, 0.0
    %v424 = vadd.f32 %v422, %v423
    %v425 = vsel %vm54, %v406, 0.0
    %v426 = vadd.f32 %v424, %v425
    %v427 = vsel %vm54, %v407, 0.0
    %v428 = vadd.f32 %v426, %v427
    %v429 = vsel %vm54, %v408, 0.0
    %v430 = vadd.f32 %v428, %v429
    %v431 = vsel %vm54, %v409, 0.0
    %v432 = vadd.f32 %v430, %v431
    %v433 = vrot.slane %v432, 4
    %v434 = vadd.f32 %v432, %v433
    %v435 = vrot.slane %v434, 2
    %v436 = vadd.f32 %v434, %v435
    %v437 = vrot.slane %v436, 1
    %v438 = vadd.f32 %v436, %v437
    %v439 = vsel %vm54, %v410, 0.0
    %v440 = vsel %vm54, %v411, 0.0
    %v441 = vadd.f32 %v439, %v440
    %v442 = vsel %vm54, %v412, 0.0
    %v443 = vadd.f32 %v441, %v442
    %v444 = vsel %vm54, %v413, 0.0
    %v445 = vadd.f32 %v443, %v444
    %v446 = vsel %vm54, %v414, 0.0
    %v447 = vadd.f32 %v445, %v446
    %v448 = vsel %vm54, %v415, 0.0
    %v449 = vadd.f32 %v447, %v448
    %v450 = vsel %vm54, %v416, 0.0
    %v451 = vadd.f32 %v449, %v450
    %v452 = vsel %vm54, %v417, 0.0
    %v453 = vadd.f32 %v451, %v452
    %v454 = vrot.slane %v453, 4
    %v455 = vadd.f32 %v453, %v454
    %v456 = vrot.slane %v455, 2
    %v457 = vadd.f32 %v455, %v456
    %v458 = vrot.slane %v457, 1
    %v459 = vadd.f32 %v457, %v458
    %v460 = vsel %vm54, %v307, 0.0
    %v461 = vsel %vm54, %v309, 0.0
    %v462 = vadd.f32 %v460, %v461
    %v463 = vsel %vm54, %v311, 0.0
    %v464 = vadd.f32 %v462, %v463
    %v465 = vsel %vm54, %v313, 0.0
    %v466 = vadd.f32 %v464, %v465
    %v467 = vsel %vm54, %v315, 0.0
    %v468 = vadd.f32 %v466, %v467
    %v469 = vsel %vm54, %v317, 0.0
    %v470 = vadd.f32 %v468, %v469
    %v471 = vsel %vm54, %v319, 0.0
    %v472 = vadd.f32 %v470, %v471
    %v473 = vsel %vm54, %v321, 0.0
    %v474 = vadd.f32 %v472, %v473
    %v475 = vrot.slane %v474, 4
    %v476 = vadd.f32 %v474, %v475
    %v477 = vrot.slane %v476, 2
    %v478 = vadd.f32 %v476, %v477
    %v479 = vrot.slane %v478, 1
    %v480 = vadd.f32 %v478, %v479
    %v481 = vsel %vm54, %v323, 0.0
    %v482 = vsel %vm54, %v325, 0.0
    %v483 = vadd.f32 %v481, %v482
    %v484 = vsel %vm54, %v327, 0.0
    %v485 = vadd.f32 %v483, %v484
    %v486 = vsel %vm54, %v329, 0.0
    %v487 = vadd.f32 %v485, %v486
    %v488 = vsel %vm54, %v331, 0.0
    %v489 = vadd.f32 %v487, %v488
    %v490 = vsel %vm54, %v333, 0.0
    %v491 = vadd.f32 %v489, %v490
    %v492 = vsel %vm54, %v335, 0.0
    %v493 = vadd.f32 %v491, %v492
    %v494 = vsel %vm54, %v337, 0.0
    %v495 = vadd.f32 %v493, %v494
    %v496 = vrot.slane %v495, 4
    %v497 = vadd.f32 %v495, %v496
    %v498 = vrot.slane %v497, 2
    %v499 = vadd.f32 %v497, %v498
    %v500 = vrot.slane %v499, 1
    %v501 = vadd.f32 %v499, %v500
    %v502 = vrcp.pop %v480
    %v503 = vmul.f32 %v438, %v502
    %v504 = vrcp.pop %v501
    %v505 = vmul.f32 %v459, %v504
    %v506 = vld [vmem:[#allocation2 + $0x40] sm:$0xff]
    %v507 = vld [vmem:[#allocation2 + $0x48] sm:$0xff]
    %v508 = vld [vmem:[#allocation2 + $0x50] sm:$0xff]
    %v509 = vld [vmem:[#allocation2 + $0x58] sm:$0xff]
    %v510 = vld [vmem:[#allocation2 + $0x111] sm:$0x1]
    %v511 = vld [vmem:[#allocation2 + $0x11b] sm:$0x1]
    %v512 = vld [vmem:[#allocation2 + $0x112] sm:$0x1]
    %v513 = vld [vmem:[#allocation2 + $0x113] sm:$0x1]
    %v514 = vlaneseq
    %v515 = vshrl.u32 %v514, 7
    %v516 = vsub.s32 0, %v515
    %v517 = vrot.slane %v510, %v516
    %vm520 = vcmask 1041409
    %v521 = vsel %vm520, %v505, %v503
    %v522 = vsel %vm54, %v521, 0
    %524 = vmatprep.subr.mxu0 0.0
    %525 = vmatpush1.msra.mxu0 %v506
    %526 = vmatprep.subr.mxu0 0.0
    %527 = vmatpush1.msra.mxu0 %v507
    %528 = vmatprep.subr.mxu0 0.0
    %529 = vmatpush1.msra.mxu0 %v508
    %530 = vmatprep.subr.mxu0 0.0
    %531 = vmatpush1.msra.mxu0 %v509
    %532 = vmatprep.subr.mxu0 0.0
    %533 = vmatpush1.msra.mxu0 0.0
    %534 = vmatprep.subr.mxu0 0.0
    %535 = vmatpush1.msra.mxu0 0.0
    %536 = vmatprep.subr.mxu0 0.0
    %537 = vmatpush1.msra.mxu0 0.0
    %538 = vmatprep.subr.mxu0 0.0
    %539 = vmatpush1.msra.mxu0 0.0
    %540 = vmatprep.subr.mxu0 0.0
    %541 = vmatpush1.msra.mxu0 0.0
    %542 = vmatprep.subr.mxu0 0.0
    %543 = vmatpush1.msra.mxu0 0.0
    %544 = vmatprep.subr.mxu0 0.0
    %545 = vmatpush1.msra.mxu0 0.0
    %546 = vmatprep.subr.mxu0 0.0
    %547 = vmatpush1.msra.mxu0 0.0
    %548 = vmatprep.subr.mxu0 0.0
    %549 = vmatpush1.msra.mxu0 0.0
    %550 = vmatprep.subr.mxu0 0.0
    %551 = vmatpush1.msra.mxu0 0.0
    %552 = vmatprep.subr.mxu0 0.0
    %553 = vmatpush1.msra.mxu0 0.0
    %554 = vmatprep.subr.mxu0 0.0
    %555 = vmatpush1.msra.mxu0 0.0
    %556 = vmatprep.subr.mxu0 0.0
    %557 = vmatpush1.msra.mxu0 0.0
    %558 = vmatprep.subr.mxu0 0.0
    %559 = vmatpush1.msra.mxu0 0.0
    %560 = vmatprep.subr.mxu0 0.0
    %561 = vmatpush1.msra.mxu0 0.0
    %562 = vmatprep.subr.mxu0 0.0
    %563 = vmatpush1.msra.mxu0 0.0
    %564 = vmatprep.subr.mxu0 0.0
    %565 = vmatpush1.msra.mxu0 0.0
    %566 = vmatprep.subr.mxu0 0.0
    %567 = vmatpush1.msra.mxu0 0.0
    %568 = vmatprep.subr.mxu0 0.0
    %569 = vmatpush1.msra.mxu0 0.0
    %570 = vmatprep.subr.mxu0 0.0
    %571 = vmatpush1.msra.mxu0 0.0
    %572 = vmatprep.subr.mxu0 0.0
    %573 = vmatpush1.msra.mxu0 0.0
    %574 = vmatprep.subr.mxu0 0.0
    %575 = vmatpush1.msra.mxu0 0.0
    %576 = vmatprep.subr.mxu0 0.0
    %577 = vmatpush1.msra.mxu0 0.0
    %578 = vmatprep.subr.mxu0 0.0
    %579 = vmatpush1.msra.mxu0 0.0
    %580 = vmatprep.subr.mxu0 0.0
    %581 = vmatpush1.msra.mxu0 0.0
    %582 = vmatprep.subr.mxu0 0.0
    %583 = vmatpush1.msra.mxu0 0.0
    %584 = vmatprep.subr.mxu0 0.0
    %585 = vmatpush1.msra.mxu0 0.0
    %586 = vmatprep.subr.mxu0 0.0
    %587 = vmatpush1.msra.mxu0 0.0
    %588 = vmatprep.mubr.f32.mxu0 0.0
    %589 = vmatmul.mubr.f32.gmra.mrb[0].mxu0 %v522
    %v590 = vpop.f32.mrb[0].mxu0
    %v591 = vadd.f32 %v517, %v590
    %v592 = vpop.f32.mrb[0].mxu0
    %593 = vdwg.mxu0
    %v594 = vlaneseq
    %v595 = vshrl.u32 %v594, 7
    %v596 = vsub.s32 0, %v595
    %v597 = vrot.slane %v511, %v596
    %v598 = vadd.f32 %v597, %v591
    %vm599 = vcmask 254976
    %v600 = vsel %vm599, %v598, 0.0
    %601 = vadd.xlane.f32.xlu0 %v600
    %v602 = vpop.xlane.xlu0 %601
    %v603 = vrcp.pop 32.0
    %v604 = vmul.f32 %v602, %v603
    %v605 = vsub.f32 %v598, %v604
    %v606 = vmul.f32 %v605, %v605
    %v607 = vsel %vm599, %v606, 0.0
    %608 = vadd.xlane.f32.xlu0 %v607
    %v609 = vpop.xlane.xlu0 %608
    %v610 = vmul.f32 %v609, %v603
    %v611 = vadd.f32 %v610, 1e-05
    %v612 = vrsqrt.pop %v611
    %v613 = vmul.f32 %v605, %v612
    %v614 = vlaneseq
    %v615 = vshrl.u32 %v614, 7
    %v616 = vsub.s32 0, %v615
    %v617 = vrot.slane %v512, %v616
    %v618 = vmul.f32 %v613, %v617
    %v619 = vlaneseq
    %v620 = vshrl.u32 %v619, 7
    %v621 = vsub.s32 0, %v620
    %v622 = vrot.slane %v513, %v621
    %v623 = vadd.f32 %v618, %v622
    %v624 = vld [vmem:[#allocation2 + $0x20] sm:$0xff]
    %v625 = vld [vmem:[#allocation2 + $0x28] sm:$0xff]
    %v626 = vld [vmem:[#allocation2 + $0x30] sm:$0xff]
    %v627 = vld [vmem:[#allocation2 + $0x38] sm:$0xff]
    %v628 = vld [vmem:[#allocation2 + $0x116] sm:$0x1]
    %v629 = vld [vmem:[#allocation2 + $0xc0] sm:$0xff]
    %v630 = vld [vmem:[#allocation2 + $0xc8] sm:$0xff]
    %v631 = vld [vmem:[#allocation2 + $0xd0] sm:$0xff]
    %v632 = vld [vmem:[#allocation2 + $0xd8] sm:$0xff]
    %v633 = vld [vmem:[#allocation2 + $0xe0] sm:$0xff]
    %v634 = vld [vmem:[#allocation2 + $0xe8] sm:$0xff]
    %v635 = vld [vmem:[#allocation2 + $0xf0] sm:$0xff]
    %v636 = vld [vmem:[#allocation2 + $0xf8] sm:$0xff]
    %v637 = vld [vmem:[#allocation2 + $0x117] sm:$0x1]
    %v638 = vld [vmem:[#allocation2 + $0x114] sm:$0x1]
    %v639 = vld [vmem:[#allocation2 + $0x115] sm:$0x1]
    %v640 = vlaneseq
    %v641 = vshrl.u32 %v640, 7
    %v642 = vsub.s32 0, %v641
    %v643 = vrot.slane %v628, %v642
    %v645 = vsel %vm54, %v623, 0
    %647 = vmatprep.subr.mxu0 0.0
    %648 = vmatpush1.msra.mxu0 %v624
    %649 = vmatprep.subr.mxu0 0.0
    %650 = vmatpush1.msra.mxu0 %v625
    %651 = vmatprep.subr.mxu0 0.0
    %652 = vmatpush1.msra.mxu0 %v626
    %653 = vmatprep.subr.mxu0 0.0
    %654 = vmatpush1.msra.mxu0 %v627
    %655 = vmatprep.subr.mxu0 0.0
    %656 = vmatpush1.msra.mxu0 0.0
    %657 = vmatprep.subr.mxu0 0.0
    %658 = vmatpush1.msra.mxu0 0.0
    %659 = vmatprep.subr.mxu0 0.0
    %660 = vmatpush1.msra.mxu0 0.0
    %661 = vmatprep.subr.mxu0 0.0
    %662 = vmatpush1.msra.mxu0 0.0
    %663 = vmatprep.subr.mxu0 0.0
    %664 = vmatpush1.msra.mxu0 0.0
    %665 = vmatprep.subr.mxu0 0.0
    %666 = vmatpush1.msra.mxu0 0.0
    %667 = vmatprep.subr.mxu0 0.0
    %668 = vmatpush1.msra.mxu0 0.0
    %669 = vmatprep.subr.mxu0 0.0
    %670 = vmatpush1.msra.mxu0 0.0
    %671 = vmatprep.subr.mxu0 0.0
    %672 = vmatpush1.msra.mxu0 0.0
    %673 = vmatprep.subr.mxu0 0.0
    %674 = vmatpush1.msra.mxu0 0.0
    %675 = vmatprep.subr.mxu0 0.0
    %676 = vmatpush1.msra.mxu0 0.0
    %677 = vmatprep.subr.mxu0 0.0
    %678 = vmatpush1.msra.mxu0 0.0
    %679 = vmatprep.subr.mxu0 0.0
    %680 = vmatpush1.msra.mxu0 0.0
    %681 = vmatprep.subr.mxu0 0.0
    %682 = vmatpush1.msra.mxu0 0.0
    %683 = vmatprep.subr.mxu0 0.0
    %684 = vmatpush1.msra.mxu0 0.0
    %685 = vmatprep.subr.mxu0 0.0
    %686 = vmatpush1.msra.mxu0 0.0
    %687 = vmatprep.subr.mxu0 0.0
    %688 = vmatpush1.msra.mxu0 0.0
    %689 = vmatprep.subr.mxu0 0.0
    %690 = vmatpush1.msra.mxu0 0.0
    %691 = vmatprep.subr.mxu0 0.0
    %692 = vmatpush1.msra.mxu0 0.0
    %693 = vmatprep.subr.mxu0 0.0
    %694 = vmatpush1.msra.mxu0 0.0
    %695 = vmatprep.subr.mxu0 0.0
    %696 = vmatpush1.msra.mxu0 0.0
    %697 = vmatprep.subr.mxu0 0.0
    %698 = vmatpush1.msra.mxu0 0.0
    %699 = vmatprep.subr.mxu0 0.0
    %700 = vmatpush1.msra.mxu0 0.0
    %701 = vmatprep.subr.mxu0 0.0
    %702 = vmatpush1.msra.mxu0 0.0
    %703 = vmatprep.subr.mxu0 0.0
    %704 = vmatpush1.msra.mxu0 0.0
    %705 = vmatprep.subr.mxu0 0.0
    %706 = vmatpush1.msra.mxu0 0.0
    %707 = vmatprep.subr.mxu0 0.0
    %708 = vmatpush1.msra.mxu0 0.0
    %709 = vmatprep.subr.mxu0 0.0
    %710 = vmatpush1.msra.mxu0 0.0
    %711 = vmatprep.mubr.f32.mxu0 0.0
    %712 = vmatmul.mubr.f32.gmra.mrb[0].mxu0 %v645
    %v713 = vpop.f32.mrb[0].mxu0
    %v714 = vadd.f32 %v643, %v713
    %v715 = vpop.f32.mrb[0].mxu0
    %716 = vdwg.mxu0
    %v717 = vmax.f32 %v714, 0.0
    %v718 = vlaneseq
    %v719 = vshrl.u32 %v718, 7
    %v720 = vsub.s32 0, %v719
    %v721 = vrot.slane %v637, %v720
    %vm722 = vcmask 523264
    %v724 = vsel %vm722, %v717, 0
    %726 = vmatprep.subr.mxu0 0.0
    %727 = vmatpush1.msra.mxu0 %v629
    %728 = vmatprep.subr.mxu0 0.0
    %729 = vmatpush1.msra.mxu0 %v630
    %730 = vmatprep.subr.mxu0 0.0
    %731 = vmatpush1.msra.mxu0 %v631
    %732 = vmatprep.subr.mxu0 0.0
    %733 = vmatpush1.msra.mxu0 %v632
    %734 = vmatprep.subr.mxu0 0.0
    %735 = vmatpush1.msra.mxu0 %v633
    %736 = vmatprep.subr.mxu0 0.0
    %737 = vmatpush1.msra.mxu0 %v634
    %738 = vmatprep.subr.mxu0 0.0
    %739 = vmatpush1.msra.mxu0 %v635
    %740 = vmatprep.subr.mxu0 0.0
    %741 = vmatpush1.msra.mxu0 %v636
    %742 = vmatprep.subr.mxu0 0.0
    %743 = vmatpush1.msra.mxu0 0.0
    %744 = vmatprep.subr.mxu0 0.0
    %745 = vmatpush1.msra.mxu0 0.0
    %746 = vmatprep.subr.mxu0 0.0
    %747 = vmatpush1.msra.mxu0 0.0
    %748 = vmatprep.subr.mxu0 0.0
    %749 = vmatpush1.msra.mxu0 0.0
    %750 = vmatprep.subr.mxu0 0.0
    %751 = vmatpush1.msra.mxu0 0.0
    %752 = vmatprep.subr.mxu0 0.0
    %753 = vmatpush1.msra.mxu0 0.0
    %754 = vmatprep.subr.mxu0 0.0
    %755 = vmatpush1.msra.mxu0 0.0
    %756 = vmatprep.subr.mxu0 0.0
    %757 = vmatpush1.msra.mxu0 0.0
    %758 = vmatprep.subr.mxu0 0.0
    %759 = vmatpush1.msra.mxu0 0.0
    %760 = vmatprep.subr.mxu0 0.0
    %761 = vmatpush1.msra.mxu0 0.0
    %762 = vmatprep.subr.mxu0 0.0
    %763 = vmatpush1.msra.mxu0 0.0
    %764 = vmatprep.subr.mxu0 0.0
    %765 = vmatpush1.msra.mxu0 0.0
    %766 = vmatprep.subr.mxu0 0.0
    %767 = vmatpush1.msra.mxu0 0.0
    %768 = vmatprep.subr.mxu0 0.0
    %769 = vmatpush1.msra.mxu0 0.0
    %770 = vmatprep.subr.mxu0 0.0
    %771 = vmatpush1.msra.mxu0 0.0
    %772 = vmatprep.subr.mxu0 0.0
    %773 = vmatpush1.msra.mxu0 0.0
    %774 = vmatprep.subr.mxu0 0.0
    %775 = vmatpush1.msra.mxu0 0.0
    %776 = vmatprep.subr.mxu0 0.0
    %777 = vmatpush1.msra.mxu0 0.0
    %778 = vmatprep.subr.mxu0 0.0
    %779 = vmatpush1.msra.mxu0 0.0
    %780 = vmatprep.subr.mxu0 0.0
    %781 = vmatpush1.msra.mxu0 0.0
    %782 = vmatprep.subr.mxu0 0.0
    %783 = vmatpush1.msra.mxu0 0.0
    %784 = vmatprep.subr.mxu0 0.0
    %785 = vmatpush1.msra.mxu0 0.0
    %786 = vmatprep.subr.mxu0 0.0
    %787 = vmatpush1.msra.mxu0 0.0
    %788 = vmatprep.subr.mxu0 0.0
    %789 = vmatpush1.msra.mxu0 0.0
    %790 = vmatprep.mubr.f32.mxu0 0.0
    %791 = vmatmul.mubr.f32.gmra.mrb[0].mxu0 %v724
    %v792 = vpop.f32.mrb[0].mxu0
    %v793 = vadd.f32 %v721, %v792
    %v794 = vpop.f32.mrb[0].mxu0
    %795 = vdwg.mxu0
    %v796 = vadd.f32 %v623, %v793
    %v797 = vsel %vm599, %v796, 0.0
    %798 = vadd.xlane.f32.xlu0 %v797
    %v799 = vpop.xlane.xlu0 %798
    %v800 = vmul.f32 %v799, %v603
    %v801 = vsub.f32 %v796, %v800
    %v802 = vmul.f32 %v801, %v801
    %v803 = vsel %vm599, %v802, 0.0
    %804 = vadd.xlane.f32.xlu0 %v803
    %v805 = vpop.xlane.xlu0 %804
    %v806 = vmul.f32 %v805, %v603
    %v807 = vadd.f32 %v806, 1e-05
    %v808 = vrsqrt.pop %v807
    %v809 = vmul.f32 %v801, %v808
    %v810 = vlaneseq
    %v811 = vshrl.u32 %v810, 7
    %v812 = vsub.s32 0, %v811
    %v813 = vrot.slane %v638, %v812
    %v814 = vmul.f32 %v809, %v813
    %v815 = vlaneseq
    %v816 = vshrl.u32 %v815, 7
    %v817 = vsub.s32 0, %v816
    %v818 = vrot.slane %v639, %v817
    %v819 = vadd.f32 %v814, %v818
    %v820 = vld [vmem:[%s1] sm:$0x3]
    %v821 = vld [vmem:[#allocation2 + $0x60] sm:$0xff]
    %v822 = vld [vmem:[#allocation2 + $0x68] sm:$0xff]
    %v823 = vld [vmem:[#allocation2 + $0x70] sm:$0xff]
    %v824 = vld [vmem:[#allocation2 + $0x78] sm:$0xff]
    %v825 = vld [vmem:[#allocation2 + $0x100] sm:$0xff]
    %v826 = vld [vmem:[#allocation2 + $0x108] sm:$0xff]
    %v827 = vld [vmem:[#allocation2 + $0x118] sm:$0x1]
    %v828 = vld [vmem:[#allocation2 + $0x80] sm:$0xff]
    %v829 = vld [vmem:[#allocation2 + $0x88] sm:$0xff]
    %v830 = vld [vmem:[#allocation2 + $0x90] sm:$0xff]
    %v831 = vld [vmem:[#allocation2 + $0x98] sm:$0xff]
    %v832 = vld [vmem:[#allocation2 + $0x119] sm:$0x1]
    %v833 = vld [vmem:[#allocation2 + $0xa0] sm:$0xff]
    %v834 = vld [vmem:[#allocation2 + $0xa8] sm:$0xff]
    %v835 = vld [vmem:[#allocation2 + $0xb0] sm:$0xff]
    %v836 = vld [vmem:[#allocation2 + $0xb8] sm:$0xff]
    %v837 = vld [vmem:[#allocation2 + $0x11a] sm:$0x1]
    %vm838 = vcmask 130048
    %v840 = vsel %vm838, %v820, 0
    %842 = vmatprep.subr.mxu0 0.0
    %843 = vmatpush1.msra.mxu0 %v825
    %844 = vmatprep.subr.mxu0 0.0
    %845 = vmatpush1.msra.mxu0 %v826
    %846 = vmatprep.subr.mxu0 0.0
    %847 = vmatpush1.msra.mxu0 0.0
    %848 = vmatprep.subr.mxu0 0.0
    %849 = vmatpush1.msra.mxu0 0.0
    %850 = vmatprep.subr.mxu0 0.0
    %851 = vmatpush1.msra.mxu0 0.0
    %852 = vmatprep.subr.mxu0 0.0
    %853 = vmatpush1.msra.mxu0 0.0
    %854 = vmatprep.subr.mxu0 0.0
    %855 = vmatpush1.msra.mxu0 0.0
    %856 = vmatprep.subr.mxu0 0.0
    %857 = vmatpush1.msra.mxu0 0.0
    %858 = vmatprep.subr.mxu0 0.0
    %859 = vmatpush1.msra.mxu0 0.0
    %860 = vmatprep.subr.mxu0 0.0
    %861 = vmatpush1.msra.mxu0 0.0
    %862 = vmatprep.subr.mxu0 0.0
    %863 = vmatpush1.msra.mxu0 0.0
    %864 = vmatprep.subr.mxu0 0.0
    %865 = vmatpush1.msra.mxu0 0.0
    %866 = vmatprep.subr.mxu0 0.0
    %867 = vmatpush1.msra.mxu0 0.0
    %868 = vmatprep.subr.mxu0 0.0
    %869 = vmatpush1.msra.mxu0 0.0
    %870 = vmatprep.subr.mxu0 0.0
    %871 = vmatpush1.msra.mxu0 0.0
    %872 = vmatprep.subr.mxu0 0.0
    %873 = vmatpush1.msra.mxu0 0.0
    %874 = vmatprep.subr.mxu0 0.0
    %875 = vmatpush1.msra.mxu0 0.0
    %876 = vmatprep.subr.mxu0 0.0
    %877 = vmatpush1.msra.mxu0 0.0
    %878 = vmatprep.subr.mxu0 0.0
    %879 = vmatpush1.msra.mxu0 0.0
    %880 = vmatprep.subr.mxu0 0.0
    %881 = vmatpush1.msra.mxu0 0.0
    %882 = vmatprep.subr.mxu0 0.0
    %883 = vmatpush1.msra.mxu0 0.0
    %884 = vmatprep.subr.mxu0 0.0
    %885 = vmatpush1.msra.mxu0 0.0
    %886 = vmatprep.subr.mxu0 0.0
    %887 = vmatpush1.msra.mxu0 0.0
    %888 = vmatprep.subr.mxu0 0.0
    %889 = vmatpush1.msra.mxu0 0.0
    %890 = vmatprep.subr.mxu0 0.0
    %891 = vmatpush1.msra.mxu0 0.0
    %892 = vmatprep.subr.mxu0 0.0
    %893 = vmatpush1.msra.mxu0 0.0
    %894 = vmatprep.subr.mxu0 0.0
    %895 = vmatpush1.msra.mxu0 0.0
    %896 = vmatprep.subr.mxu0 0.0
    %897 = vmatpush1.msra.mxu0 0.0
    %898 = vmatprep.subr.mxu0 0.0
    %899 = vmatpush1.msra.mxu0 0.0
    %900 = vmatprep.subr.mxu0 0.0
    %901 = vmatpush1.msra.mxu0 0.0
    %902 = vmatprep.subr.mxu0 0.0
    %903 = vmatpush1.msra.mxu0 0.0
    %904 = vmatprep.subr.mxu0 0.0
    %905 = vmatpush1.msra.mxu0 0.0
    %906 = vmatprep.mubr.f32.mxu0 0.0
    %907 = vmatmul.mubr.f32.gmra.mrb[0].mxu0 %v840
    %v908 = vpop.f32.mrb[0].mxu0
    %v909 = vadd.f32 0.0, %v908
    %v910 = vpop.f32.mrb[0].mxu0
    %911 = vdwg.mxu0
    %v913 = vsel %vm54, %v819, 0
    %915 = vmatprep.subr.mxu0 0.0
    %916 = vmatpush1.msra.mxu0 %v821
    %917 = vmatprep.subr.mxu0 0.0
    %918 = vmatpush1.msra.mxu0 %v822
    %919 = vmatprep.subr.mxu0 0.0
    %920 = vmatpush1.msra.mxu0 %v823
    %921 = vmatprep.subr.mxu0 0.0
    %922 = vmatpush1.msra.mxu0 %v824
    %923 = vmatprep.subr.mxu0 0.0
    %924 = vmatpush1.msra.mxu0 0.0
    %925 = vmatprep.subr.mxu0 0.0
    %926 = vmatpush1.msra.mxu0 0.0
    %927 = vmatprep.subr.mxu0 0.0
    %928 = vmatpush1.msra.mxu0 0.0
    %929 = vmatprep.subr.mxu0 0.0
    %930 = vmatpush1.msra.mxu0 0.0
    %931 = vmatprep.subr.mxu0 0.0
    %932 = vmatpush1.msra.mxu0 0.0
    %933 = vmatprep.subr.mxu0 0.0
    %934 = vmatpush1.msra.mxu0 0.0
    %935 = vmatprep.subr.mxu0 0.0
    %936 = vmatpush1.msra.mxu0 0.0
    %937 = vmatprep.subr.mxu0 0.0
    %938 = vmatpush1.msra.mxu0 0.0
    %939 = vmatprep.subr.mxu0 0.0
    %940 = vmatpush1.msra.mxu0 0.0
    %941 = vmatprep.subr.mxu0 0.0
    %942 = vmatpush1.msra.mxu0 0.0
    %943 = vmatprep.subr.mxu0 0.0
    %944 = vmatpush1.msra.mxu0 0.0
    %945 = vmatprep.subr.mxu0 0.0
    %946 = vmatpush1.msra.mxu0 0.0
    %947 = vmatprep.subr.mxu0 0.0
    %948 = vmatpush1.msra.mxu0 0.0
    %949 = vmatprep.subr.mxu0 0.0
    %950 = vmatpush1.msra.mxu0 0.0
    %951 = vmatprep.subr.mxu0 0.0
    %952 = vmatpush1.msra.mxu0 0.0
    %953 = vmatprep.subr.mxu0 0.0
    %954 = vmatpush1.msra.mxu0 0.0
    %955 = vmatprep.subr.mxu0 0.0
    %956 = vmatpush1.msra.mxu0 0.0
    %957 = vmatprep.subr.mxu0 0.0
    %958 = vmatpush1.msra.mxu0 0.0
    %959 = vmatprep.subr.mxu0 0.0
    %960 = vmatpush1.msra.mxu0 0.0
    %961 = vmatprep.subr.mxu0 0.0
    %962 = vmatpush1.msra.mxu0 0.0
    %963 = vmatprep.subr.mxu0 0.0
    %964 = vmatpush1.msra.mxu0 0.0
    %965 = vmatprep.subr.mxu0 0.0
    %966 = vmatpush1.msra.mxu0 0.0
    %967 = vmatprep.subr.mxu0 0.0
    %968 = vmatpush1.msra.mxu0 0.0
    %969 = vmatprep.subr.mxu0 0.0
    %970 = vmatpush1.msra.mxu0 0.0
    %971 = vmatprep.subr.mxu0 0.0
    %972 = vmatpush1.msra.mxu0 0.0
    %973 = vmatprep.subr.mxu0 0.0
    %974 = vmatpush1.msra.mxu0 0.0
    %975 = vmatprep.subr.mxu0 0.0
    %976 = vmatpush1.msra.mxu0 0.0
    %977 = vmatprep.subr.mxu0 0.0
    %978 = vmatpush1.msra.mxu0 0.0
    %979 = vmatprep.mubr.f32.mxu0 0.0
    %980 = vmatmul.mubr.f32.gmra.mrb[0].mxu0 %v913
    %v981 = vpop.f32.mrb[0].mxu0
    %v982 = vadd.f32 %v909, %v981
    %v983 = vpop.f32.mrb[0].mxu0
    %984 = vdwg.mxu0
    %v985 = vlaneseq
    %v986 = vshrl.u32 %v985, 7
    %v987 = vsub.s32 0, %v986
    %v988 = vrot.slane %v827, %v987
    %v989 = vadd.f32 %v982, %v988
    %v990 = vmax.f32 %v989, 0.0
    %v991 = vlaneseq
    %v992 = vshrl.u32 %v991, 7
    %v993 = vsub.s32 0, %v992
    %v994 = vrot.slane %v832, %v993
    %v996 = vsel %vm54, %v990, 0
    %998 = vmatprep.subr.mxu0 0.0
    %999 = vmatpush1.msra.mxu0 %v828
    %1000 = vmatprep.subr.mxu0 0.0
    %1001 = vmatpush1.msra.mxu0 %v829
    %1002 = vmatprep.subr.mxu0 0.0
    %1003 = vmatpush1.msra.mxu0 %v830
    %1004 = vmatprep.subr.mxu0 0.0
    %1005 = vmatpush1.msra.mxu0 %v831
    %1006 = vmatprep.subr.mxu0 0.0
    %1007 = vmatpush1.msra.mxu0 0.0
    %1008 = vmatprep.subr.mxu0 0.0
    %1009 = vmatpush1.msra.mxu0 0.0
    %1010 = vmatprep.subr.mxu0 0.0
    %1011 = vmatpush1.msra.mxu0 0.0
    %1012 = vmatprep.subr.mxu0 0.0
    %1013 = vmatpush1.msra.mxu0 0.0
    %1014 = vmatprep.subr.mxu0 0.0
    %1015 = vmatpush1.msra.mxu0 0.0
    %1016 = vmatprep.subr.mxu0 0.0
    %1017 = vmatpush1.msra.mxu0 0.0
    %1018 = vmatprep.subr.mxu0 0.0
    %1019 = vmatpush1.msra.mxu0 0.0
    %1020 = vmatprep.subr.mxu0 0.0
    %1021 = vmatpush1.msra.mxu0 0.0
    %1022 = vmatprep.subr.mxu0 0.0
    %1023 = vmatpush1.msra.mxu0 0.0
    %1024 = vmatprep.subr.mxu0 0.0
    %1025 = vmatpush1.msra.mxu0 0.0
    %1026 = vmatprep.subr.mxu0 0.0
    %1027 = vmatpush1.msra.mxu0 0.0
    %1028 = vmatprep.subr.mxu0 0.0
    %1029 = vmatpush1.msra.mxu0 0.0
    %1030 = vmatprep.subr.mxu0 0.0
    %1031 = vmatpush1.msra.mxu0 0.0
    %1032 = vmatprep.subr.mxu0 0.0
    %1033 = vmatpush1.msra.mxu0 0.0
    %1034 = vmatprep.subr.mxu0 0.0
    %1035 = vmatpush1.msra.mxu0 0.0
    %1036 = vmatprep.subr.mxu0 0.0
    %1037 = vmatpush1.msra.mxu0 0.0
    %1038 = vmatprep.subr.mxu0 0.0
    %1039 = vmatpush1.msra.mxu0 0.0
    %1040 = vmatprep.subr.mxu0 0.0
    %1041 = vmatpush1.msra.mxu0 0.0
    %1042 = vmatprep.subr.mxu0 0.0
    %1043 = vmatpush1.msra.mxu0 0.0
    %1044 = vmatprep.subr.mxu0 0.0
    %1045 = vmatpush1.msra.mxu0 0.0
    %1046 = vmatprep.subr.mxu0 0.0
    %1047 = vmatpush1.msra.mxu0 0.0
    %1048 = vmatprep.subr.mxu0 0.0
    %1049 = vmatpush1.msra.mxu0 0.0
    %1050 = vmatprep.subr.mxu0 0.0
    %1051 = vmatpush1.msra.mxu0 0.0
    %1052 = vmatprep.subr.mxu0 0.0
    %1053 = vmatpush1.msra.mxu0 0.0
    %1054 = vmatprep.subr.mxu0 0.0
    %1055 = vmatpush1.msra.mxu0 0.0
    %1056 = vmatprep.subr.mxu0 0.0
    %1057 = vmatpush1.msra.mxu0 0.0
    %1058 = vmatprep.subr.mxu0 0.0
    %1059 = vmatpush1.msra.mxu0 0.0
    %1060 = vmatprep.subr.mxu0 0.0
    %1061 = vmatpush1.msra.mxu0 0.0
    %1062 = vmatprep.mubr.f32.mxu0 0.0
    %1063 = vmatmul.mubr.f32.gmra.mrb[0].mxu0 %v996
    %v1064 = vpop.f32.mrb[0].mxu0
    %v1065 = vadd.f32 %v994, %v1064
    %v1066 = vpop.f32.mrb[0].mxu0
    %1067 = vdwg.mxu0
    %v1068 = vmax.f32 %v1065, 0.0
    %v1069 = vlaneseq
    %v1070 = vshrl.u32 %v1069, 7
    %v1071 = vsub.s32 0, %v1070
    %v1072 = vrot.slane %v837, %v1071
    %v1074 = vsel %vm54, %v1068, 0
    %1076 = vmatprep.subr.mxu0 0.0
    %1077 = vmatpush1.msra.mxu0 %v833
    %1078 = vmatprep.subr.mxu0 0.0
    %1079 = vmatpush1.msra.mxu0 %v834
    %1080 = vmatprep.subr.mxu0 0.0
    %1081 = vmatpush1.msra.mxu0 %v835
    %1082 = vmatprep.subr.mxu0 0.0
    %1083 = vmatpush1.msra.mxu0 %v836
    %1084 = vmatprep.subr.mxu0 0.0
    %1085 = vmatpush1.msra.mxu0 0.0
    %1086 = vmatprep.subr.mxu0 0.0
    %1087 = vmatpush1.msra.mxu0 0.0
    %1088 = vmatprep.subr.mxu0 0.0
    %1089 = vmatpush1.msra.mxu0 0.0
    %1090 = vmatprep.subr.mxu0 0.0
    %1091 = vmatpush1.msra.mxu0 0.0
    %1092 = vmatprep.subr.mxu0 0.0
    %1093 = vmatpush1.msra.mxu0 0.0
    %1094 = vmatprep.subr.mxu0 0.0
    %1095 = vmatpush1.msra.mxu0 0.0
    %1096 = vmatprep.subr.mxu0 0.0
    %1097 = vmatpush1.msra.mxu0 0.0
    %1098 = vmatprep.subr.mxu0 0.0
    %1099 = vmatpush1.msra.mxu0 0.0
    %1100 = vmatprep.subr.mxu0 0.0
    %1101 = vmatpush1.msra.mxu0 0.0
    %1102 = vmatprep.subr.mxu0 0.0
    %1103 = vmatpush1.msra.mxu0 0.0
    %1104 = vmatprep.subr.mxu0 0.0
    %1105 = vmatpush1.msra.mxu0 0.0
    %1106 = vmatprep.subr.mxu0 0.0
    %1107 = vmatpush1.msra.mxu0 0.0
    %1108 = vmatprep.subr.mxu0 0.0
    %1109 = vmatpush1.msra.mxu0 0.0
    %1110 = vmatprep.subr.mxu0 0.0
    %1111 = vmatpush1.msra.mxu0 0.0
    %1112 = vmatprep.subr.mxu0 0.0
    %1113 = vmatpush1.msra.mxu0 0.0
    %1114 = vmatprep.subr.mxu0 0.0
    %1115 = vmatpush1.msra.mxu0 0.0
    %1116 = vmatprep.subr.mxu0 0.0
    %1117 = vmatpush1.msra.mxu0 0.0
    %1118 = vmatprep.subr.mxu0 0.0
    %1119 = vmatpush1.msra.mxu0 0.0
    %1120 = vmatprep.subr.mxu0 0.0
    %1121 = vmatpush1.msra.mxu0 0.0
    %1122 = vmatprep.subr.mxu0 0.0
    %1123 = vmatpush1.msra.mxu0 0.0
    %1124 = vmatprep.subr.mxu0 0.0
    %1125 = vmatpush1.msra.mxu0 0.0
    %1126 = vmatprep.subr.mxu0 0.0
    %1127 = vmatpush1.msra.mxu0 0.0
    %1128 = vmatprep.subr.mxu0 0.0
    %1129 = vmatpush1.msra.mxu0 0.0
    %1130 = vmatprep.subr.mxu0 0.0
    %1131 = vmatpush1.msra.mxu0 0.0
    %1132 = vmatprep.subr.mxu0 0.0
    %1133 = vmatpush1.msra.mxu0 0.0
    %1134 = vmatprep.subr.mxu0 0.0
    %1135 = vmatpush1.msra.mxu0 0.0
    %1136 = vmatprep.subr.mxu0 0.0
    %1137 = vmatpush1.msra.mxu0 0.0
    %1138 = vmatprep.subr.mxu0 0.0
    %1139 = vmatpush1.msra.mxu0 0.0
    %1140 = vmatprep.mubr.f32.mxu0 0.0
    %1141 = vmatmul.mubr.f32.gmra.mrb[0].mxu0 %v1074
    %v1142 = vpop.f32.mrb[0].mxu0
    %v1143 = vadd.f32 %v1072, %v1142
    %v1144 = vpop.f32.mrb[0].mxu0
    %1145 = vdwg.mxu0
    %1146 = vst [vmem:[#allocation5] sm:$0x3] %v1143
    // Predicated region
    $region18: #{tpu_custom_call.1} parent=1 // pred_check
      _
    $region19: #{tpu_custom_call.1} parent=1 // pred_check_branch
      %1148 = sbr.rel (0) target = $region21
    $region20: #{tpu_custom_call.1} parent=1 // pred_region
      %s1150 = ssub.s32 32, 32
      %1151 = vsyncadd [#allocation4], %s1150
      %s1153 = sshll.u32 [#allocation5], 4
      %s1154 = int_to_ptr.vmem [resolvable:$true] %s1153
      %1156 = dma.vmem_to_hbm [thread:$0]  %s1154, 32, %s3, [#allocation4]
    $region21: #{tpu_custom_call.1} parent=1 // pred_fallthru
      _
    // Predicated region
    $region22: #{tpu_custom_call.1} parent=1 // pred_check
      _
    $region23: #{tpu_custom_call.1} parent=1 // pred_check_branch
      %1158 = sbr.rel (0) target = $region25
    $region24: #{tpu_custom_call.1} parent=1 // pred_region
      %1159 = dma.done [#allocation4], 32
    $region25: #{tpu_custom_call.1} parent=1 // pred_fallthru
      _
    %1160 = vsyncpa [#allocation3], 1
    %1161 = vsyncpa [#allocation4], 1

</llo_original>
